<compile_context>
chip_gen: v7x
topology: tpu7x:2x2x1
jax: 0.10.0
libtpu: 0.0.40
codegen_flags: <defaults>
</compile_context>

<pallas_src>
import jax
import jax.numpy as jnp
from jax.experimental import pallas as pl
from jax.experimental.pallas import tpu as pltpu


def _round_up(x, m):
    return ((x + m - 1) // m) * m


def _tri_attn_kernel(v1_ref, v2_ref, v3_ref, b_ref,
                     ht_ref, hc_ref, hp_ref, o_ref):
    """Per-tile body.

    v1/v2/v3_ref : (1, hdim)  folded weight vectors, VMEM-resident across grid
    b_ref        : (1,)       folded scalar bias (SMEM)
    ht/hc/hp_ref : (TM, hdim) streamed activation tiles
    o_ref        : (TM, 1)    output tile
    """
    acc = (ht_ref[...] * v1_ref[...]
           + hc_ref[...] * v2_ref[...]
           + hp_ref[...] * v3_ref[...])                      # (TM, hdim) f32
    out = jnp.sum(acc, axis=-1, keepdims=True) + b_ref[0]    # (TM, 1)
    o_ref[...] = out.astype(o_ref.dtype)


def tri_attn_comb_path_ranker(h_text, h_con, h_path, w1, w2, w3, w_out, bias,
                              *, tm_max=1024):
    """Pallas implementation of TriAttnCombPathRanker.forward.

    h_text / h_con / h_path: (..., hdim) float32 (same leading shape).
    Returns (..., 1) float32.
    """
    lead_shape = h_text.shape[:-1]
    hdim = int(h_text.shape[-1])
    rows = 1
    for d in lead_shape:
        rows *= int(d)

    f32 = jnp.float32
    ht = h_text.reshape(rows, hdim).astype(f32)
    hc = h_con.reshape(rows, hdim).astype(f32)
    hp = h_path.reshape(rows, hdim).astype(f32)

    # ---- fold the output projection into the three weights (done once in XLA)
    w_out_f = w_out.astype(f32)
    v1 = (w1.astype(f32) @ w_out_f).reshape(1, hdim)
    v2 = (w2.astype(f32) @ w_out_f).reshape(1, hdim)
    v3 = (w3.astype(f32) @ w_out_f).reshape(1, hdim)
    b_fold = (bias.astype(f32).reshape(()) * jnp.sum(w_out_f)).reshape(1)

    # ---- choose row tile size (TM) so double-buffered tiles fit easily ------
    hdim_lanes = _round_up(hdim, 128)                 # VMEM lane footprint
    tm = min(tm_max, max(8, (6 * 1024 * 1024) // (3 * 2 * hdim_lanes * 4)))
    tm = max(8, (tm // 8) * 8)                        # sublane multiple
    tm = min(tm, _round_up(rows, 8))                  # don't over-tile tiny inputs
    rows_p = _round_up(rows, tm)

    pad = rows_p - rows
    if pad:
        ht = jnp.pad(ht, ((0, pad), (0, 0)))
        hc = jnp.pad(hc, ((0, pad), (0, 0)))
        hp = jnp.pad(hp, ((0, pad), (0, 0)))

    grid = (rows_p // tm,)

    act_spec = pl.BlockSpec((tm, hdim), lambda i: (i, 0))      # streamed tiles
    wvec_spec = pl.BlockSpec((1, hdim), lambda i: (0, 0))      # VMEM-resident
    smem_spec = pl.BlockSpec(memory_space=pltpu.MemorySpace.SMEM)

    # Scoped-VMEM sizing: 2 buffers x 3 inputs + 2 output buffers + weights.
    vmem_need = (2 * 3 * tm * hdim_lanes + 2 * tm * 128 + 3 * 8 * hdim_lanes) * 4
    vmem_limit = int(min(100 * 1024 * 1024, max(32 * 1024 * 1024, 2 * vmem_need)))

    cost = pl.CostEstimate(
        flops=6 * rows_p * hdim,
        transcendentals=0,
        bytes_accessed=(3 * rows_p * hdim + rows_p + 3 * hdim + 1) * 4,
    )

    out = pl.pallas_call(
        _tri_attn_kernel,
        out_shape=jax.ShapeDtypeStruct((rows_p, 1), f32),
        grid=grid,
        in_specs=[wvec_spec, wvec_spec, wvec_spec,   # folded weight vectors
                  smem_spec,                         # folded scalar bias
                  act_spec, act_spec, act_spec],     # h_text, h_con, h_path
        out_specs=pl.BlockSpec((tm, 1), lambda i: (i, 0)),
        compiler_params=pltpu.CompilerParams(
            dimension_semantics=("parallel",),
            vmem_limit_bytes=vmem_limit),
        cost_estimate=cost,
    )(v1, v2, v3, b_fold, ht, hc, hp)

    return out[:rows].reshape(*lead_shape, 1)


def _xavier_uniform(key, shape):
    fan_in, fan_out = shape[0], shape[1]
    bound = (6.0 / (fan_in + fan_out)) ** 0.5
    return jax.random.uniform(key, shape, jnp.float32, -bound, bound)


def init_params(key, hdim):
    k1, k2, k3, k4 = jax.random.split(key, 4)
    w1 = _xavier_uniform(k1, (hdim, hdim))
    w2 = _xavier_uniform(k2, (hdim, hdim))
    w3 = _xavier_uniform(k3, (hdim, hdim))
    w_out = _xavier_uniform(k4, (hdim, 1))
    bias = jnp.zeros((1,), jnp.float32)  # torch.nn.init.constant_(bias, 0)
    return w1, w2, w3, w_out, bias


if __name__ == "__main__":
    key = jax.random.PRNGKey(0)
    batch, seq, hdim = 2, 8, 32

    kp, kt, kc, kq = jax.random.split(key, 4)
    w1, w2, w3, w_out, bias = init_params(kp, hdim)

    h_text = jax.random.normal(kt, (batch, seq, hdim), jnp.float32)
    h_con = jax.random.normal(kc, (batch, seq, hdim), jnp.float32)
    h_path = jax.random.normal(kq, (batch, seq, hdim), jnp.float32)

    fwd = jax.jit(tri_attn_comb_path_ranker)

    out = jax.block_until_ready(fwd(h_text, h_con, h_path, w1, w2, w3, w_out, bias))
    ref = (h_text @ w1 + h_con @ w2 + h_path @ w3 + bias) @ w_out
    assert out.shape == (batch, seq, 1)
    assert jnp.allclose(out, ref, atol=1e-4, rtol=1e-4), \
        float(jnp.max(jnp.abs(out - ref)))

    # Second check: exercises the multi-tile grid + row-padding (tail) path.
    B2, S2, H2 = 2, 1500, 64
    wp = init_params(jax.random.PRNGKey(2), H2)
    k1, k2, k3 = jax.random.split(jax.random.PRNGKey(1), 3)
    a = jax.random.normal(k1, (B2, S2, H2), jnp.float32)
    b = jax.random.normal(k2, (B2, S2, H2), jnp.float32)
    c = jax.random.normal(k3, (B2, S2, H2), jnp.float32)
    out2 = jax.block_until_ready(fwd(a, b, c, *wp))
    ref2 = (a @ wp[0] + b @ wp[1] + c @ wp[2] + wp[4]) @ wp[3]
    assert out2.shape == (B2, S2, 1)
    assert jnp.allclose(out2, ref2, atol=1e-3, rtol=1e-3), \
        float(jnp.max(jnp.abs(out2 - ref2)))

    print("KERNEL_OK")
</pallas_src>

<mosaic_0001>
module attributes {stable_mosaic.version = 11 : i64} {
  func.func @_tri_attn_kernel(%arg0: i32, %arg1: memref<1x32xf32, #tpu.memory_space<vmem>>, %arg2: memref<1x32xf32, #tpu.memory_space<vmem>>, %arg3: memref<1x32xf32, #tpu.memory_space<vmem>>, %arg4: memref<1xf32, #tpu.memory_space<smem>>, %arg5: memref<16x32xf32, #tpu.memory_space<vmem>>, %arg6: memref<16x32xf32, #tpu.memory_space<vmem>>, %arg7: memref<16x32xf32, #tpu.memory_space<vmem>>, %arg8: memref<16x1xf32, #tpu.memory_space<vmem>>) attributes {dimension_semantics = [#tpu.dimension_semantics<parallel>], iteration_bounds = array<i64: 1>, scalar_prefetch = 0 : i64, scratch_operands = 0 : i64, tpu.core_type = #tpu.core_type<tc>, window_params = [{pipeline_mode = #tpu.pipeline_mode<synchronous>, transform_indices = @transform_0, window_bounds = array<i64: 1, 32>}, {pipeline_mode = #tpu.pipeline_mode<synchronous>, transform_indices = @transform_1, window_bounds = array<i64: 1, 32>}, {pipeline_mode = #tpu.pipeline_mode<synchronous>, transform_indices = @transform_2, window_bounds = array<i64: 1, 32>}, {transform_indices = @transform_3, window_bounds = array<i64: 1>}, {transform_indices = @transform_4, window_bounds = array<i64: 16, 32>}, {transform_indices = @transform_5, window_bounds = array<i64: 16, 32>}, {transform_indices = @transform_6, window_bounds = array<i64: 16, 32>}, {transform_indices = @transform_7, window_bounds = array<i64: 16, 1>}]} {
    %c0 = arith.constant 0 : index
    %c0_0 = arith.constant 0 : index
    %0 = vector.load %arg5[%c0, %c0_0] : memref<16x32xf32, #tpu.memory_space<vmem>>, vector<16x32xf32>
    %c0_1 = arith.constant 0 : index
    %c0_2 = arith.constant 0 : index
    %1 = vector.load %arg1[%c0_1, %c0_2] : memref<1x32xf32, #tpu.memory_space<vmem>>, vector<1x32xf32>
    %2 = vector.broadcast %1 : vector<1x32xf32> to vector<16x32xf32>
    %3 = arith.mulf %0, %2 : vector<16x32xf32>
    %c0_3 = arith.constant 0 : index
    %c0_4 = arith.constant 0 : index
    %4 = vector.load %arg6[%c0_3, %c0_4] : memref<16x32xf32, #tpu.memory_space<vmem>>, vector<16x32xf32>
    %c0_5 = arith.constant 0 : index
    %c0_6 = arith.constant 0 : index
    %5 = vector.load %arg2[%c0_5, %c0_6] : memref<1x32xf32, #tpu.memory_space<vmem>>, vector<1x32xf32>
    %6 = vector.broadcast %5 : vector<1x32xf32> to vector<16x32xf32>
    %7 = arith.mulf %4, %6 : vector<16x32xf32>
    %8 = arith.addf %3, %7 : vector<16x32xf32>
    %c0_7 = arith.constant 0 : index
    %c0_8 = arith.constant 0 : index
    %9 = vector.load %arg7[%c0_7, %c0_8] : memref<16x32xf32, #tpu.memory_space<vmem>>, vector<16x32xf32>
    %c0_9 = arith.constant 0 : index
    %c0_10 = arith.constant 0 : index
    %10 = vector.load %arg3[%c0_9, %c0_10] : memref<1x32xf32, #tpu.memory_space<vmem>>, vector<1x32xf32>
    %11 = vector.broadcast %10 : vector<1x32xf32> to vector<16x32xf32>
    %12 = arith.mulf %9, %11 : vector<16x32xf32>
    %13 = arith.addf %8, %12 : vector<16x32xf32>
    %cst = arith.constant dense<0.000000e+00> : vector<16xf32>
    %14 = vector.multi_reduction <add>, %13, %cst [1] : vector<16x32xf32> to vector<16xf32>
    %15 = vector.shape_cast %14 : vector<16xf32> to vector<16x1xf32>
    %c0_11 = arith.constant 0 : index
    %16 = memref.load %arg4[%c0_11] : memref<1xf32, #tpu.memory_space<smem>>
    %17 = vector.broadcast %16 : f32 to vector<16x1xf32>
    %18 = arith.addf %15, %17 : vector<16x1xf32>
    %c0_12 = arith.constant 0 : index
    %c0_13 = arith.constant 0 : index
    %19 = vector.load %arg8[%c0_12, %c0_13] : memref<16x1xf32, #tpu.memory_space<vmem>>, vector<16x1xf32>
    tpu.vector_store %arg8[%c0_12, %c0_13], %18 {strides = array<i32>} : memref<16x1xf32, #tpu.memory_space<vmem>>, vector<16x1xf32>,
    return
  }
  func.func @transform_0(%arg0: i32) -> (i32, i32) {
    %c0_i32 = arith.constant 0 : i32
    %c0_i32_0 = arith.constant 0 : i32
    %c0_i32_1 = arith.constant 0 : i32
    return %c0_i32, %c0_i32_0 : i32, i32
  }
  func.func @transform_1(%arg0: i32) -> (i32, i32) {
    %c0_i32 = arith.constant 0 : i32
    %c0_i32_0 = arith.constant 0 : i32
    %c0_i32_1 = arith.constant 0 : i32
    return %c0_i32, %c0_i32_0 : i32, i32
  }
  func.func @transform_2(%arg0: i32) -> (i32, i32) {
    %c0_i32 = arith.constant 0 : i32
    %c0_i32_0 = arith.constant 0 : i32
    %c0_i32_1 = arith.constant 0 : i32
    return %c0_i32, %c0_i32_0 : i32, i32
  }
  func.func @transform_3(%arg0: i32) -> i32 {
    %c0_i32 = arith.constant 0 : i32
    %c0_i32_0 = arith.constant 0 : i32
    return %c0_i32 : i32
  }
  func.func @transform_4(%arg0: i32) -> (i32, i32) {
    %c0_i32 = arith.constant 0 : i32
    %c0_i32_0 = arith.constant 0 : i32
    return %arg0, %c0_i32 : i32, i32
  }
  func.func @transform_5(%arg0: i32) -> (i32, i32) {
    %c0_i32 = arith.constant 0 : i32
    %c0_i32_0 = arith.constant 0 : i32
    return %arg0, %c0_i32 : i32, i32
  }
  func.func @transform_6(%arg0: i32) -> (i32, i32) {
    %c0_i32 = arith.constant 0 : i32
    %c0_i32_0 = arith.constant 0 : i32
    return %arg0, %c0_i32 : i32, i32
  }
  func.func @transform_7(%arg0: i32) -> (i32, i32) {
    %c0_i32 = arith.constant 0 : i32
    %c0_i32_0 = arith.constant 0 : i32
    return %arg0, %c0_i32 : i32, i32
  }
}

</mosaic_0001>

<llo_original>
// kernel: tri_attn_comb_path_ranker.1
$region0: #{tri_attn_comb_path_ranker.1}
  #allocation0 [shape = 'u32[]', space=smem, size = 0x4, offset = 0x4, fixed_abs, tag = 'smem constant byte address 0x4 - core index']
  #allocation1 [shape = 'u32[144,128]{1,0:T(1,128)}', space=vmem, size = 0x12000, scoped, tag = 'internal scratch']
  #allocation2 [shape = 'f32[1]{0:T(128)S(6)}', space=smem, size = 0x200, scoped, tag = 'scoped memory for tri_attn_comb_path_ranker.1']
  %s0 = inlined_call_operand.vmem [shape: f32[1,32], index: 0, kind: input, shape index: {}]
  %s1 = inlined_call_operand.vmem [shape: f32[1,32], index: 1, kind: input, shape index: {}]
  %s2 = inlined_call_operand.vmem [shape: f32[1,32], index: 2, kind: input, shape index: {}]
  %s3 = inlined_call_operand.<no memory space> [shape: f32[1], index: 3, kind: input, shape index: {}]
  %s4 = inlined_call_operand.vmem [shape: f32[16,32], index: 4, kind: input, shape index: {}]
  %s5 = inlined_call_operand.vmem [shape: f32[16,32], index: 5, kind: input, shape index: {}]
  %s6 = inlined_call_operand.vmem [shape: f32[16,32], index: 6, kind: input, shape index: {}]
  %s7 = inlined_call_operand.vmem [shape: f32[16,1], index: 7, kind: output, shape index: {}]
  %s8 = sld [smem:[#allocation0]]
  $region38: #{tri_attn_comb_path_ranker.1} parent=0
    _
  %s10 = ssub.s32 1, %s8
  %s11 = scalar_select 0, %s10, %s8
  %12 = sst [smem:[#allocation2]] %s3
  // Predicated region
  $region2: #{tri_attn_comb_path_ranker.1} parent=0 // pred_check
    _
  $region3: #{tri_attn_comb_path_ranker.1} parent=0 // pred_check_branch
    %14 = sbr.rel (0) target = $region5
  $region4: #{tri_attn_comb_path_ranker.1} parent=0 // pred_region
    _
  $region5: #{tri_attn_comb_path_ranker.1} parent=0 // pred_fallthru
    _
  // Predicated region
  $region6: #{tri_attn_comb_path_ranker.1} parent=0 // pred_check
    _
  $region7: #{tri_attn_comb_path_ranker.1} parent=0 // pred_check_branch
    %16 = sbr.rel (0) target = $region9
  $region8: #{tri_attn_comb_path_ranker.1} parent=0 // pred_region
    _
  $region9: #{tri_attn_comb_path_ranker.1} parent=0 // pred_fallthru
    _
  // Predicated region
  $region10: #{tri_attn_comb_path_ranker.1} parent=0 // pred_check
    _
  $region11: #{tri_attn_comb_path_ranker.1} parent=0 // pred_check_branch
    %18 = sbr.rel (0) target = $region13
  $region12: #{tri_attn_comb_path_ranker.1} parent=0 // pred_region
    _
  $region13: #{tri_attn_comb_path_ranker.1} parent=0 // pred_fallthru
    _
  // Predicated region
  $region14: #{tri_attn_comb_path_ranker.1} parent=0 // pred_check
    _
  $region15: #{tri_attn_comb_path_ranker.1} parent=0 // pred_check_branch
    %20 = sbr.rel (0) target = $region17
  $region16: #{tri_attn_comb_path_ranker.1} parent=0 // pred_region
    _
  $region17: #{tri_attn_comb_path_ranker.1} parent=0 // pred_fallthru
    _
  // Predicated region
  $region18: #{tri_attn_comb_path_ranker.1} parent=0 // pred_check
    _
  $region19: #{tri_attn_comb_path_ranker.1} parent=0 // pred_check_branch
    %22 = sbr.rel (0) target = $region21
  $region20: #{tri_attn_comb_path_ranker.1} parent=0 // pred_region
    _
  $region21: #{tri_attn_comb_path_ranker.1} parent=0 // pred_fallthru
    _
  // Predicated region
  $region22: #{tri_attn_comb_path_ranker.1} parent=0 // pred_check
    _
  $region23: #{tri_attn_comb_path_ranker.1} parent=0 // pred_check_branch
    %24 = sbr.rel (0) target = $region25
  $region24: #{tri_attn_comb_path_ranker.1} parent=0 // pred_region
    _
  $region25: #{tri_attn_comb_path_ranker.1} parent=0 // pred_fallthru
    _
  // Predicated region
  $region26: #{tri_attn_comb_path_ranker.1} parent=0 // pred_check
    _
  $region27: #{tri_attn_comb_path_ranker.1} parent=0 // pred_check_branch
    %26 = sbr.rel (0) target = $region29
  $region28: #{tri_attn_comb_path_ranker.1} parent=0 // pred_region
    _
  $region29: #{tri_attn_comb_path_ranker.1} parent=0 // pred_fallthru
    _
  %v27 = vld [vmem:[%s4] sm:$0xff]
  %v28 = vld [vmem:[%s4 + $0x8] sm:$0xff]
  %v29 = vld [vmem:[%s0] sm:$0x1]
  %v31 = vlaneseq
  %v32 = vshrl.u32 %v31, 7
  %v33 = vsub.s32 0, %v32
  %v34 = vrot.slane %v29, %v33
  %v36 = vmul.f32 %v27, %v34
  %v37 = vmul.f32 %v28, %v34
  %v38 = vld [vmem:[%s5] sm:$0xff]
  %v39 = vld [vmem:[%s5 + $0x8] sm:$0xff]
  %v40 = vld [vmem:[%s1] sm:$0x1]
  %v42 = vlaneseq
  %v43 = vshrl.u32 %v42, 7
  %v44 = vsub.s32 0, %v43
  %v45 = vrot.slane %v40, %v44
  %v47 = vmul.f32 %v38, %v45
  %v48 = vmul.f32 %v39, %v45
  %v49 = vadd.f32 %v36, %v47
  %v50 = vadd.f32 %v37, %v48
  %v51 = vld [vmem:[%s6] sm:$0xff]
  %v52 = vld [vmem:[%s6 + $0x8] sm:$0xff]
  %v53 = vld [vmem:[%s2] sm:$0x1]
  %v55 = vlaneseq
  %v56 = vshrl.u32 %v55, 7
  %v57 = vsub.s32 0, %v56
  %v58 = vrot.slane %v53, %v57
  %v60 = vmul.f32 %v51, %v58
  %v61 = vmul.f32 %v52, %v58
  %v62 = vadd.f32 %v49, %v60
  %v63 = vadd.f32 %v50, %v61
  %vm64 = vcmask 261120
  %v65 = vsel %vm64, %v62, 0.0
  %66 = vadd.xlane.f32.xlu0 %v65
  %v67 = vpop.xlane.xlu0 %66
  %v68 = vsel %vm64, %v63, 0.0
  %69 = vadd.xlane.f32.xlu0 %v68
  %v70 = vpop.xlane.xlu0 %69
  %s71 = sld [smem:[#allocation2]]
  %v72 = vstv %s71
  %v73 = vadd.f32 %v67, %v72
  %v74 = vadd.f32 %v70, %v72
  %vm75 = vcmask 7168
  %76 = vst.msk [vmem:[%s7] sm:$0xff] %vm75, %v73
  %77 = vst.msk [vmem:[%s7 + $0x8] sm:$0xff] %vm75, %v74
  // Predicated region
  $region30: #{tri_attn_comb_path_ranker.1} parent=0 // pred_check
    _
  $region31: #{tri_attn_comb_path_ranker.1} parent=0 // pred_check_branch
    %79 = sbr.rel (0) target = $region33
  $region32: #{tri_attn_comb_path_ranker.1} parent=0 // pred_region
    _
  $region33: #{tri_attn_comb_path_ranker.1} parent=0 // pred_fallthru
    _
  // Predicated region
  $region34: #{tri_attn_comb_path_ranker.1} parent=0 // pred_check
    _
  $region35: #{tri_attn_comb_path_ranker.1} parent=0 // pred_check_branch
    %81 = sbr.rel (0) target = $region37
  $region36: #{tri_attn_comb_path_ranker.1} parent=0 // pred_region
    _
  $region37: #{tri_attn_comb_path_ranker.1} parent=0 // pred_fallthru
    _

</llo_original>
